<compile_context>
chip_gen: v5e
topology: v5e:2x2
jax: 0.10.0
libtpu: 0.0.40
codegen_flags: <defaults>
</compile_context>

<pallas_src>
import functools

import jax
import jax.numpy as jnp
from jax.experimental import pallas as pl
from jax.experimental.pallas import tpu as pltpu


def _make_fused_kernel(n_layers: int, douts, eps: float = 1e-5):
    """Build a fused kernel: [Linear -> BN(batch stats) -> ReLU]*L-1
    -> Linear -> BN -> sigmoid(-z).  Layers are unrolled at trace time."""

    def kernel(x_ref, *refs):
        w_refs = refs[:n_layers]          # each (Din_i, Dout_i), pre-transposed
        gb_ref = refs[n_layers]           # (2*L, Dmax): rows 2i = gamma_i, 2i+1 = beta_i
        o_ref = refs[n_layers + 1]        # (B, Dout_last)

        z = x_ref[...].astype(jnp.float32)
        gb = gb_ref[...]

        for i in range(n_layers):
            d = douts[i]
            # Linear (bias omitted: it cancels in the batch-stat BN below).
            z = jnp.dot(z, w_refs[i][...], preferred_element_type=jnp.float32)
            # BatchNorm1d over the batch axis, biased variance, single centered temp.
            m = jnp.mean(z, axis=0, keepdims=True)
            zc = z - m
            v = jnp.mean(zc * zc, axis=0, keepdims=True)
            z = zc * jax.lax.rsqrt(v + eps) * gb[2 * i:2 * i + 1, :d] \
                + gb[2 * i + 1:2 * i + 2, :d]
            if i != n_layers - 1:
                z = jnp.maximum(z, 0.0)   # ReLU

        o_ref[...] = jax.nn.sigmoid(-z).astype(o_ref.dtype)

    return kernel


def _forward_impl(x, w_ts, gb):
    """x: (B, Din0); w_ts: tuple of pre-transposed weights (Din_i, Dout_i);
    gb: (2*L, Dmax) packed gamma/beta."""
    n_layers = len(w_ts)
    douts = tuple(int(w.shape[1]) for w in w_ts)
    B = x.shape[0]
    kernel = _make_fused_kernel(n_layers, douts)
    vmem = functools.partial(pl.BlockSpec, memory_space=pltpu.VMEM)
    return pl.pallas_call(
        kernel,
        out_shape=jax.ShapeDtypeStruct((B, douts[-1]), jnp.float32),
        in_specs=[vmem()] * (1 + n_layers + 1),
        out_specs=vmem(),
    )(x, *w_ts, gb)


# Single jitted entry point: one pallas_call, zero per-call layout ops.
cure_rate_network_forward = jax.jit(_forward_impl)


def init_params(key, dims):
    """Deterministic init mimicking nn.Linear default (U[-1/sqrt(fan_in), ..]).
    Bias is kept here only for the reference check (the kernel drops it)."""
    params = []
    for i in range(len(dims) - 1):
        d_in, d_out = dims[i], dims[i + 1]
        key, kw, kb = jax.random.split(key, 3)
        bound = 1.0 / jnp.sqrt(jnp.float32(d_in))
        w = jax.random.uniform(kw, (d_out, d_in), jnp.float32, -bound, bound)
        b = jax.random.uniform(kb, (d_out,), jnp.float32, -bound, bound)
        gamma = jnp.ones((d_out,), jnp.float32)     # BatchNorm1d weight init
        beta = jnp.zeros((d_out,), jnp.float32)     # BatchNorm1d bias init
        params.append(dict(w=w, b=b, gamma=gamma, beta=beta))
    return params


def pack_params(raw_params):
    """Hoisted layout work: pre-transpose weights, pack gamma/beta into one array."""
    w_ts = tuple(jnp.transpose(p["w"]) for p in raw_params)       # (Din, Dout)
    dmax = max(int(w.shape[1]) for w in w_ts)
    rows = []
    for p in raw_params:
        d = p["gamma"].shape[0]
        rows.append(jnp.pad(p["gamma"], (0, dmax - d)))
        rows.append(jnp.pad(p["beta"], (0, dmax - d)))
    gb = jnp.stack(rows, axis=0).astype(jnp.float32)              # (2*L, dmax)
    return w_ts, gb


def _reference_forward(x, raw_params, eps=1e-5):
    """Pure-JAX reference with the ORIGINAL semantics (bias included),
    demonstrating that dropping the bias before batch-stat BN is exact."""
    n = len(raw_params)
    z = x
    for i, p in enumerate(raw_params):
        z = z @ p["w"].T + p["b"]
        m = jnp.mean(z, axis=0, keepdims=True)
        v = jnp.mean((z - m) ** 2, axis=0, keepdims=True)
        z = (z - m) / jnp.sqrt(v + eps) * p["gamma"] + p["beta"]
        if i != n - 1:
            z = jnp.maximum(z, 0.0)
    return jax.nn.sigmoid(-z)


if __name__ == "__main__":
    # config = {'dims': [16, 32, 32, 1], 'activation': 'ReLU', 'norm': 'True', 'drop': None}
    dims = [16, 32, 32, 1]
    batch = 8

    key = jax.random.PRNGKey(0)
    key, kx = jax.random.split(key)
    x = jax.random.normal(kx, (batch, dims[0]), jnp.float32)

    raw_params = init_params(key, dims)
    w_ts, gb = pack_params(raw_params)          # hoisted out of the forward path

    pi = cure_rate_network_forward(x, w_ts, gb)
    pi = jax.block_until_ready(pi)

    ref = _reference_forward(x, raw_params)
    assert pi.shape == (batch, dims[-1])
    assert jnp.all(jnp.isfinite(pi))
    assert jnp.max(jnp.abs(pi - ref)) < 1e-4

    print("KERNEL_OK")
</pallas_src>

<mosaic_0001>
module attributes {stable_mosaic.version = 11 : i64} {
  func.func @kernel(%arg0: memref<8x16xf32, #tpu.memory_space<vmem>>, %arg1: memref<16x32xf32, #tpu.memory_space<vmem>>, %arg2: memref<32x32xf32, #tpu.memory_space<vmem>>, %arg3: memref<32x1xf32, #tpu.memory_space<vmem>>, %arg4: memref<6x32xf32, #tpu.memory_space<vmem>>, %arg5: memref<8x1xf32, #tpu.memory_space<vmem>>) attributes {dimension_semantics = [], scalar_prefetch = 0 : i64, scratch_operands = 0 : i64, tpu.core_type = #tpu.core_type<tc>} {
    %c0 = arith.constant 0 : index
    %c0_0 = arith.constant 0 : index
    %0 = vector.load %arg0[%c0, %c0_0] : memref<8x16xf32, #tpu.memory_space<vmem>>, vector<8x16xf32>
    %c0_1 = arith.constant 0 : index
    %c0_2 = arith.constant 0 : index
    %1 = vector.load %arg4[%c0_1, %c0_2] : memref<6x32xf32, #tpu.memory_space<vmem>>, vector<6x32xf32>
    %c0_3 = arith.constant 0 : index
    %c0_4 = arith.constant 0 : index
    %2 = vector.load %arg1[%c0_3, %c0_4] : memref<16x32xf32, #tpu.memory_space<vmem>>, vector<16x32xf32>
    %cst = arith.constant dense<0.000000e+00> : vector<8x32xf32>
    %3 = tpu.matmul %0, %2, %cst {dimension_numbers = #tpu.dot_dimension_numbers<[1], [0], [0], [1], [0, 0, 1, 1], [], []>} : vector<8x16xf32>, vector<16x32xf32>, vector<8x32xf32> -> vector<8x32xf32>
    %cst_5 = arith.constant dense<0.000000e+00> : vector<32xf32>
    %4 = vector.multi_reduction <add>, %3, %cst_5 [0] : vector<8x32xf32> to vector<32xf32>
    %5 = vector.shape_cast %4 : vector<32xf32> to vector<1x32xf32>
    %cst_6 = arith.constant 8.000000e+00 : f32
    %6 = vector.broadcast %cst_6 : f32 to vector<1x32xf32>
    %7 = arith.divf %5, %6 : vector<1x32xf32>
    %8 = vector.broadcast %7 : vector<1x32xf32> to vector<8x32xf32>
    %9 = arith.subf %3, %8 : vector<8x32xf32>
    %10 = arith.mulf %9, %9 : vector<8x32xf32>
    %cst_7 = arith.constant dense<0.000000e+00> : vector<32xf32>
    %11 = vector.multi_reduction <add>, %10, %cst_7 [0] : vector<8x32xf32> to vector<32xf32>
    %12 = vector.shape_cast %11 : vector<32xf32> to vector<1x32xf32>
    %cst_8 = arith.constant 8.000000e+00 : f32
    %13 = vector.broadcast %cst_8 : f32 to vector<1x32xf32>
    %14 = arith.divf %12, %13 : vector<1x32xf32>
    %cst_9 = arith.constant 9.99999974E-6 : f32
    %15 = vector.broadcast %cst_9 : f32 to vector<1x32xf32>
    %16 = arith.addf %14, %15 : vector<1x32xf32>
    %17 = math.rsqrt %16 : vector<1x32xf32>
    %18 = vector.broadcast %17 : vector<1x32xf32> to vector<8x32xf32>
    %19 = arith.mulf %9, %18 : vector<8x32xf32>
    %20 = vector.extract_strided_slice %1 {offsets = [0, 0], sizes = [1, 32], strides = [1, 1]} : vector<6x32xf32> to vector<1x32xf32>
    %21 = vector.broadcast %20 : vector<1x32xf32> to vector<8x32xf32>
    %22 = arith.mulf %19, %21 : vector<8x32xf32>
    %23 = vector.extract_strided_slice %1 {offsets = [1, 0], sizes = [1, 32], strides = [1, 1]} : vector<6x32xf32> to vector<1x32xf32>
    %24 = vector.broadcast %23 : vector<1x32xf32> to vector<8x32xf32>
    %25 = arith.addf %22, %24 : vector<8x32xf32>
    %cst_10 = arith.constant 0.000000e+00 : f32
    %26 = vector.broadcast %cst_10 : f32 to vector<8x32xf32>
    %27 = arith.maximumf %25, %26 : vector<8x32xf32>
    %c0_11 = arith.constant 0 : index
    %c0_12 = arith.constant 0 : index
    %28 = vector.load %arg2[%c0_11, %c0_12] : memref<32x32xf32, #tpu.memory_space<vmem>>, vector<32x32xf32>
    %cst_13 = arith.constant dense<0.000000e+00> : vector<8x32xf32>
    %29 = tpu.matmul %27, %28, %cst_13 {dimension_numbers = #tpu.dot_dimension_numbers<[1], [0], [0], [1], [0, 0, 1, 1], [], []>} : vector<8x32xf32>, vector<32x32xf32>, vector<8x32xf32> -> vector<8x32xf32>
    %cst_14 = arith.constant dense<0.000000e+00> : vector<32xf32>
    %30 = vector.multi_reduction <add>, %29, %cst_14 [0] : vector<8x32xf32> to vector<32xf32>
    %31 = vector.shape_cast %30 : vector<32xf32> to vector<1x32xf32>
    %cst_15 = arith.constant 8.000000e+00 : f32
    %32 = vector.broadcast %cst_15 : f32 to vector<1x32xf32>
    %33 = arith.divf %31, %32 : vector<1x32xf32>
    %34 = vector.broadcast %33 : vector<1x32xf32> to vector<8x32xf32>
    %35 = arith.subf %29, %34 : vector<8x32xf32>
    %36 = arith.mulf %35, %35 : vector<8x32xf32>
    %cst_16 = arith.constant dense<0.000000e+00> : vector<32xf32>
    %37 = vector.multi_reduction <add>, %36, %cst_16 [0] : vector<8x32xf32> to vector<32xf32>
    %38 = vector.shape_cast %37 : vector<32xf32> to vector<1x32xf32>
    %cst_17 = arith.constant 8.000000e+00 : f32
    %39 = vector.broadcast %cst_17 : f32 to vector<1x32xf32>
    %40 = arith.divf %38, %39 : vector<1x32xf32>
    %cst_18 = arith.constant 9.99999974E-6 : f32
    %41 = vector.broadcast %cst_18 : f32 to vector<1x32xf32>
    %42 = arith.addf %40, %41 : vector<1x32xf32>
    %43 = math.rsqrt %42 : vector<1x32xf32>
    %44 = vector.broadcast %43 : vector<1x32xf32> to vector<8x32xf32>
    %45 = arith.mulf %35, %44 : vector<8x32xf32>
    %46 = vector.extract_strided_slice %1 {offsets = [2, 0], sizes = [1, 32], strides = [1, 1]} : vector<6x32xf32> to vector<1x32xf32>
    %47 = vector.broadcast %46 : vector<1x32xf32> to vector<8x32xf32>
    %48 = arith.mulf %45, %47 : vector<8x32xf32>
    %49 = vector.extract_strided_slice %1 {offsets = [3, 0], sizes = [1, 32], strides = [1, 1]} : vector<6x32xf32> to vector<1x32xf32>
    %50 = vector.broadcast %49 : vector<1x32xf32> to vector<8x32xf32>
    %51 = arith.addf %48, %50 : vector<8x32xf32>
    %cst_19 = arith.constant 0.000000e+00 : f32
    %52 = vector.broadcast %cst_19 : f32 to vector<8x32xf32>
    %53 = arith.maximumf %51, %52 : vector<8x32xf32>
    %c0_20 = arith.constant 0 : index
    %c0_21 = arith.constant 0 : index
    %54 = vector.load %arg3[%c0_20, %c0_21] : memref<32x1xf32, #tpu.memory_space<vmem>>, vector<32x1xf32>
    %cst_22 = arith.constant dense<0.000000e+00> : vector<8x1xf32>
    %55 = tpu.matmul %53, %54, %cst_22 {dimension_numbers = #tpu.dot_dimension_numbers<[1], [0], [0], [1], [0, 0, 1, 1], [], []>} : vector<8x32xf32>, vector<32x1xf32>, vector<8x1xf32> -> vector<8x1xf32>
    %cst_23 = arith.constant dense<0.000000e+00> : vector<1xf32>
    %56 = vector.multi_reduction <add>, %55, %cst_23 [0] : vector<8x1xf32> to vector<1xf32>
    %57 = vector.shape_cast %56 : vector<1xf32> to vector<1x1xf32>
    %cst_24 = arith.constant 8.000000e+00 : f32
    %58 = vector.broadcast %cst_24 : f32 to vector<1x1xf32>
    %59 = arith.divf %57, %58 : vector<1x1xf32>
    %60 = vector.broadcast %59 : vector<1x1xf32> to vector<8x1xf32>
    %61 = arith.subf %55, %60 : vector<8x1xf32>
    %62 = arith.mulf %61, %61 : vector<8x1xf32>
    %cst_25 = arith.constant dense<0.000000e+00> : vector<1xf32>
    %63 = vector.multi_reduction <add>, %62, %cst_25 [0] : vector<8x1xf32> to vector<1xf32>
    %64 = vector.shape_cast %63 : vector<1xf32> to vector<1x1xf32>
    %cst_26 = arith.constant 8.000000e+00 : f32
    %65 = vector.broadcast %cst_26 : f32 to vector<1x1xf32>
    %66 = arith.divf %64, %65 : vector<1x1xf32>
    %cst_27 = arith.constant 9.99999974E-6 : f32
    %67 = vector.broadcast %cst_27 : f32 to vector<1x1xf32>
    %68 = arith.addf %66, %67 : vector<1x1xf32>
    %69 = math.rsqrt %68 : vector<1x1xf32>
    %70 = vector.broadcast %69 : vector<1x1xf32> to vector<8x1xf32>
    %71 = arith.mulf %61, %70 : vector<8x1xf32>
    %72 = vector.extract_strided_slice %1 {offsets = [4, 0], sizes = [1, 1], strides = [1, 1]} : vector<6x32xf32> to vector<1x1xf32>
    %73 = vector.broadcast %72 : vector<1x1xf32> to vector<8x1xf32>
    %74 = arith.mulf %71, %73 : vector<8x1xf32>
    %75 = vector.extract_strided_slice %1 {offsets = [5, 0], sizes = [1, 1], strides = [1, 1]} : vector<6x32xf32> to vector<1x1xf32>
    %76 = vector.broadcast %75 : vector<1x1xf32> to vector<8x1xf32>
    %77 = arith.addf %74, %76 : vector<8x1xf32>
    %cst_28 = arith.constant 0.000000e+00 : f32
    %78 = vector.broadcast %cst_28 : f32 to vector<8x1xf32>
    %79 = arith.subf %78, %77 : vector<8x1xf32>
    %80 = arith.negf %79 : vector<8x1xf32>
    %81 = math.exp %80 : vector<8x1xf32>
    %cst_29 = arith.constant 1.000000e+00 : f32
    %82 = vector.broadcast %cst_29 : f32 to vector<8x1xf32>
    %83 = arith.addf %82, %81 : vector<8x1xf32>
    %84 = arith.divf %82, %83 : vector<8x1xf32>
    %c0_30 = arith.constant 0 : index
    %c0_31 = arith.constant 0 : index
    %85 = vector.load %arg5[%c0_30, %c0_31] : memref<8x1xf32, #tpu.memory_space<vmem>>, vector<8x1xf32>
    tpu.vector_store %arg5[%c0_30, %c0_31], %84 {strides = array<i32>} : memref<8x1xf32, #tpu.memory_space<vmem>>, vector<8x1xf32>,
    return
  }
}

</mosaic_0001>

<llo_original>
// kernel: _forward_impl.1
$region0: #{_forward_impl.1}
  #allocation0 [shape = 'u32[]', space=smem, size = 0x4, offset = 0x4, fixed_abs, tag = 'smem constant byte address 0x4 - core index']
  #allocation1 [shape = 'u32[72,128]{1,0:T(1,128)}', space=vmem, size = 0x9000, scoped, tag = 'internal scratch']
  %s0 = inlined_call_operand.hbm [shape: f32[8,16], index: 0, kind: input, shape index: {}]
  %s1 = inlined_call_operand.hbm [shape: f32[16,32], index: 1, kind: input, shape index: {}]
  %s2 = inlined_call_operand.vmem [shape: f32[32,32], index: 2, kind: input, shape index: {}]
  %s3 = inlined_call_operand.vmem [shape: f32[32,1], index: 3, kind: input, shape index: {}]
  %s4 = inlined_call_operand.hbm [shape: f32[6,32], index: 4, kind: input, shape index: {}]
  %s5 = inlined_call_operand.vmem [shape: f32[8,1], index: 5, kind: output, shape index: {}]
  %s6 = sld [smem:[#allocation0]]
  $region42: #{_forward_impl.1} parent=0
    _
  %s8 = ssub.s32 1, %s6
  %s9 = scalar_select 0, %s8, %s6
  $region1: #{_forward_impl.1} parent=0
    #allocation2 [shape = 'u8[4096]{0}', space=vmem, size = 0x1000, scoped, tag = 'input window, operand 0, single buffered']
    #allocation3 [shape = 's32[1]{0}', space=sflag, size = 0x4, scoped, tag = 'scoped memory for _forward_impl.1']
    #allocation4 [shape = 'u8[8192]{0}', space=vmem, size = 0x2000, scoped, tag = 'input window, operand 1, single buffered']
    #allocation5 [shape = 's32[1]{0}', space=sflag, size = 0x4, scoped, tag = 'scoped memory for _forward_impl.1']
    #allocation6 [shape = 'u8[4096]{0}', space=vmem, size = 0x1000, scoped, tag = 'input window, operand 4, single buffered']
    %10 = vsyncpa [#allocation3], 0
    %11 = vsyncpa [#allocation5], 0
    // Predicated region
    $region2: #{_forward_impl.1} parent=1 // pred_check
      _
    $region3: #{_forward_impl.1} parent=1 // pred_check_branch
      %13 = sbr.rel (0) target = $region5
    $region4: #{_forward_impl.1} parent=1 // pred_region
      %15 = vsyncadd [#allocation3], 0
      %s17 = sshll.u32 %s0, 4
      %s18 = int_to_ptr.hbm [resolvable:$true] %s17
      %s19 = sshll.u32 [#allocation2], 4
      %s20 = int_to_ptr.vmem [resolvable:$true] %s19
      %22 = dma.hbm_to_vmem [thread:$0]  %s18, 128, %s20, [#allocation3]
    $region5: #{_forward_impl.1} parent=1 // pred_fallthru
      _
    // Predicated region
    $region6: #{_forward_impl.1} parent=1 // pred_check
      _
    $region7: #{_forward_impl.1} parent=1 // pred_check_branch
      %24 = sbr.rel (0) target = $region9
    $region8: #{_forward_impl.1} parent=1 // pred_region
      %26 = vsyncadd [#allocation5], 0
      %s27 = sshll.u32 %s1, 4
      %s28 = int_to_ptr.hbm [resolvable:$true] %s27
      %s29 = sshll.u32 [#allocation4], 4
      %s30 = int_to_ptr.vmem [resolvable:$true] %s29
      %35 = dma.hbm_to_vmem [thread:$0]  %s28, 256, %s30, [#allocation5], 128, 128, 8
    $region9: #{_forward_impl.1} parent=1 // pred_fallthru
      _
    // Predicated region
    $region10: #{_forward_impl.1} parent=1 // pred_check
      _
    $region11: #{_forward_impl.1} parent=1 // pred_check_branch
      %37 = sbr.rel (0) target = $region13
    $region12: #{_forward_impl.1} parent=1 // pred_region
      _
    $region13: #{_forward_impl.1} parent=1 // pred_fallthru
      _
    // Predicated region
    $region14: #{_forward_impl.1} parent=1 // pred_check
      _
    $region15: #{_forward_impl.1} parent=1 // pred_check_branch
      %39 = sbr.rel (0) target = $region17
    $region16: #{_forward_impl.1} parent=1 // pred_region
      _
    $region17: #{_forward_impl.1} parent=1 // pred_fallthru
      _
    // Predicated region
    $region18: #{_forward_impl.1} parent=1 // pred_check
      _
    $region19: #{_forward_impl.1} parent=1 // pred_check_branch
      %41 = sbr.rel (0) target = $region21
    $region20: #{_forward_impl.1} parent=1 // pred_region
      %43 = vsyncadd [#allocation5], 0
      %s45 = sshll.u32 %s4, 4
      %s46 = int_to_ptr.hbm [resolvable:$true] %s45
      %s47 = sshll.u32 [#allocation6], 4
      %s48 = int_to_ptr.vmem [resolvable:$true] %s47
      %50 = dma.hbm_to_vmem [thread:$0]  %s46, 128, %s48, [#allocation5]
    $region21: #{_forward_impl.1} parent=1 // pred_fallthru
      _
    // Predicated region
    $region22: #{_forward_impl.1} parent=1 // pred_check
      _
    $region23: #{_forward_impl.1} parent=1 // pred_check_branch
      %52 = sbr.rel (0) target = $region25
    $region24: #{_forward_impl.1} parent=1 // pred_region
      %54 = dma.done [#allocation3], 128
    $region25: #{_forward_impl.1} parent=1 // pred_fallthru
      _
    // Predicated region
    $region26: #{_forward_impl.1} parent=1 // pred_check
      _
    $region27: #{_forward_impl.1} parent=1 // pred_check_branch
      %56 = sbr.rel (0) target = $region29
    $region28: #{_forward_impl.1} parent=1 // pred_region
      %58 = dma.done [#allocation5], 256
    $region29: #{_forward_impl.1} parent=1 // pred_fallthru
      _
    // Predicated region
    $region30: #{_forward_impl.1} parent=1 // pred_check
      _
    $region31: #{_forward_impl.1} parent=1 // pred_check_branch
      %60 = sbr.rel (0) target = $region33
    $region32: #{_forward_impl.1} parent=1 // pred_region
      %62 = dma.done [#allocation5], 128
    $region33: #{_forward_impl.1} parent=1 // pred_fallthru
      _
    %v63 = vld [vmem:[#allocation2] sm:$0xff]
    %v64 = vld [vmem:[#allocation6] sm:$0x3f]
    %v65 = vld [vmem:[#allocation4] sm:$0xff]
    %v66 = vld [vmem:[#allocation4 + $0x8] sm:$0xff]
    %vm67 = vcmask 130048
    %v69 = vsel %vm67, %v63, 0
    %71 = vmatpush.msra.mxu0 0.0
    %72 = vmatpush.msra.mxu0 0.0
    %73 = vmatpush.msra.mxu0 0.0
    %74 = vmatpush.msra.mxu0 0.0
    %75 = vmatpush.msra.mxu0 0.0
    %76 = vmatpush.msra.mxu0 0.0
    %77 = vmatpush.msra.mxu0 0.0
    %78 = vmatpush.msra.mxu0 0.0
    %79 = vmatpush.msra.mxu0 0.0
    %80 = vmatpush.msra.mxu0 0.0
    %81 = vmatpush.msra.mxu0 0.0
    %82 = vmatpush.msra.mxu0 0.0
    %83 = vmatpush.msra.mxu0 0.0
    %84 = vmatpush.msra.mxu0 0.0
    %85 = vmatpush.msra.mxu0 %v66
    %86 = vmatpush.msra.mxu0 %v65
    %87 = vmatmul.f32.gmra.mxu0 %v69
    %v88 = vpop.f32.mrf.mxu0
    %v89 = vadd.f32 0.0, %v88
    %90 = vdwg.mxu0
    %vm91 = vcmask 261120
    %v92 = vsel %vm91, %v89, 0.0
    %v93 = vrot.slane %v92, 4
    %v94 = vadd.f32 %v92, %v93
    %v95 = vrot.slane %v94, 2
    %v96 = vadd.f32 %v94, %v95
    %v97 = vrot.slane %v96, 1
    %v98 = vadd.f32 %v96, %v97
    %v99 = vrcp.pop 8.0
    %v100 = vmul.f32 8.0, %v99
    %v101 = vsub.f32 1.0, %v100
    %v102 = vmul.f32 %v99, %v101
    %v103 = vadd.f32 %v99, %v102
    %vm104 = vweird.f32 %v99
    %v105 = vsel %vm104, %v99, %v103
    %v106 = vmul.f32 %v98, %v105
    %v107 = vsub.f32 %v89, %v106
    %v108 = vmul.f32 %v107, %v107
    %v109 = vsel %vm91, %v108, 0.0
    %v110 = vrot.slane %v109, 4
    %v111 = vadd.f32 %v109, %v110
    %v112 = vrot.slane %v111, 2
    %v113 = vadd.f32 %v111, %v112
    %v114 = vrot.slane %v113, 1
    %v115 = vadd.f32 %v113, %v114
    %v116 = vmul.f32 %v115, %v105
    %v117 = vadd.f32 %v116, 1e-05
    %v118 = vrsqrt.pop %v117
    %v119 = vmul.f32 %v118, %v117
    %v120 = vmul.f32 %v119, %v118
    %v121 = vmul.f32 0.5, %v120
    %v122 = vsub.f32 1.5, %v121
    %v123 = vmul.f32 %v118, %v122
    %vm124 = vweird.f32 %v117
    %vm125 = vweird.f32 %v118
    %vm126 = vmor %vm124, %vm125
    %v127 = vsel %vm126, %v118, %v123
    %v128 = vmul.f32 %v107, %v127
    %v129 = vperm.slane %v64, 0
    %v130 = vmul.f32 %v128, %v129
    %v131 = vperm.slane %v64, 1
    %v132 = vadd.f32 %v130, %v131
    %v133 = vmax.f32 %v132, 0.0
    %v134 = vld [vmem:[%s2] sm:$0xff]
    %v135 = vld [vmem:[%s2 + $0x8] sm:$0xff]
    %v136 = vld [vmem:[%s2 + $0x10] sm:$0xff]
    %v137 = vld [vmem:[%s2 + $0x18] sm:$0xff]
    %v139 = vsel %vm91, %v133, 0
    %141 = vmatpush.msra.mxu0 0.0
    %142 = vmatpush.msra.mxu0 0.0
    %143 = vmatpush.msra.mxu0 0.0
    %144 = vmatpush.msra.mxu0 0.0
    %145 = vmatpush.msra.mxu0 0.0
    %146 = vmatpush.msra.mxu0 0.0
    %147 = vmatpush.msra.mxu0 0.0
    %148 = vmatpush.msra.mxu0 0.0
    %149 = vmatpush.msra.mxu0 0.0
    %150 = vmatpush.msra.mxu0 0.0
    %151 = vmatpush.msra.mxu0 0.0
    %152 = vmatpush.msra.mxu0 0.0
    %153 = vmatpush.msra.mxu0 %v137
    %154 = vmatpush.msra.mxu0 %v136
    %155 = vmatpush.msra.mxu0 %v135
    %156 = vmatpush.msra.mxu0 %v134
    %157 = vmatmul.f32.gmra.mxu0 %v139
    %v158 = vpop.f32.mrf.mxu0
    %v159 = vadd.f32 0.0, %v158
    %160 = vdwg.mxu0
    %v161 = vsel %vm91, %v159, 0.0
    %v162 = vrot.slane %v161, 4
    %v163 = vadd.f32 %v161, %v162
    %v164 = vrot.slane %v163, 2
    %v165 = vadd.f32 %v163, %v164
    %v166 = vrot.slane %v165, 1
    %v167 = vadd.f32 %v165, %v166
    %v168 = vmul.f32 %v167, %v105
    %v169 = vsub.f32 %v159, %v168
    %v170 = vmul.f32 %v169, %v169
    %v171 = vsel %vm91, %v170, 0.0
    %v172 = vrot.slane %v171, 4
    %v173 = vadd.f32 %v171, %v172
    %v174 = vrot.slane %v173, 2
    %v175 = vadd.f32 %v173, %v174
    %v176 = vrot.slane %v175, 1
    %v177 = vadd.f32 %v175, %v176
    %v178 = vmul.f32 %v177, %v105
    %v179 = vadd.f32 %v178, 1e-05
    %v180 = vrsqrt.pop %v179
    %v181 = vmul.f32 %v180, %v179
    %v182 = vmul.f32 %v181, %v180
    %v183 = vmul.f32 0.5, %v182
    %v184 = vsub.f32 1.5, %v183
    %v185 = vmul.f32 %v180, %v184
    %vm186 = vweird.f32 %v179
    %vm187 = vweird.f32 %v180
    %vm188 = vmor %vm186, %vm187
    %v189 = vsel %vm188, %v180, %v185
    %v190 = vmul.f32 %v169, %v189
    %v191 = vperm.slane %v64, 2
    %v192 = vmul.f32 %v190, %v191
    %v193 = vperm.slane %v64, 3
    %v194 = vadd.f32 %v192, %v193
    %v195 = vmax.f32 %v194, 0.0
    %v196 = vld [vmem:[%s3] sm:$0xff]
    %v197 = vld [vmem:[%s3 + $0x8] sm:$0xff]
    %v198 = vld [vmem:[%s3 + $0x10] sm:$0xff]
    %v199 = vld [vmem:[%s3 + $0x18] sm:$0xff]
    %v201 = vsel %vm91, %v195, 0
    %203 = vmatpush.msra.mxu0 0.0
    %204 = vmatpush.msra.mxu0 0.0
    %205 = vmatpush.msra.mxu0 0.0
    %206 = vmatpush.msra.mxu0 0.0
    %207 = vmatpush.msra.mxu0 0.0
    %208 = vmatpush.msra.mxu0 0.0
    %209 = vmatpush.msra.mxu0 0.0
    %210 = vmatpush.msra.mxu0 0.0
    %211 = vmatpush.msra.mxu0 0.0
    %212 = vmatpush.msra.mxu0 0.0
    %213 = vmatpush.msra.mxu0 0.0
    %214 = vmatpush.msra.mxu0 0.0
    %215 = vmatpush.msra.mxu0 %v199
    %216 = vmatpush.msra.mxu0 %v198
    %217 = vmatpush.msra.mxu0 %v197
    %218 = vmatpush.msra.mxu0 %v196
    %219 = vmatmul.f32.gmra.mxu0 %v201
    %v220 = vpop.f32.mrf.mxu0
    %v221 = vadd.f32 0.0, %v220
    %222 = vdwg.mxu0
    %vm223 = vcmask 7168
    %v224 = vsel %vm223, %v221, 0.0
    %v225 = vrot.slane %v224, 4
    %v226 = vadd.f32 %v224, %v225
    %v227 = vrot.slane %v226, 2
    %v228 = vadd.f32 %v226, %v227
    %v229 = vrot.slane %v228, 1
    %v230 = vadd.f32 %v228, %v229
    %v231 = vmul.f32 %v230, %v105
    %v232 = vsub.f32 %v221, %v231
    %v233 = vmul.f32 %v232, %v232
    %v234 = vsel %vm223, %v233, 0.0
    %v235 = vrot.slane %v234, 4
    %v236 = vadd.f32 %v234, %v235
    %v237 = vrot.slane %v236, 2
    %v238 = vadd.f32 %v236, %v237
    %v239 = vrot.slane %v238, 1
    %v240 = vadd.f32 %v238, %v239
    %v241 = vmul.f32 %v240, %v105
    %v242 = vadd.f32 %v241, 1e-05
    %v243 = vrsqrt.pop %v242
    %v244 = vmul.f32 %v243, %v242
    %v245 = vmul.f32 %v244, %v243
    %v246 = vmul.f32 0.5, %v245
    %v247 = vsub.f32 1.5, %v246
    %v248 = vmul.f32 %v243, %v247
    %vm249 = vweird.f32 %v242
    %vm250 = vweird.f32 %v243
    %vm251 = vmor %vm249, %vm250
    %v252 = vsel %vm251, %v243, %v248
    %v253 = vmul.f32 %v232, %v252
    %v254 = vperm.slane %v64, 4
    %v255 = vmul.f32 %v253, %v254
    %v256 = vperm.slane %v64, 5
    %v257 = vadd.f32 %v255, %v256
    %v258 = vsub.f32 0.0, %v257
    %v259 = vxor.u32 %v258, 2147483648
    %v260 = vmul.f32 %v259, 1.442695
    %v261 = vpow.pop %v260
    %v262 = vadd.f32 %v261, 1.0
    %v263 = vrcp.pop %v262
    %v264 = vmul.f32 %v262, %v263
    %v265 = vsub.f32 1.0, %v264
    %v266 = vmul.f32 %v263, %v265
    %v267 = vadd.f32 %v263, %v266
    %vm268 = vweird.f32 %v262
    %vm269 = vweird.f32 %v263
    %vm270 = vmor %vm268, %vm269
    %v271 = vsel %vm270, %v263, %v267
    %v272 = vand.u32 2147483647, %v262
    %vm273 = vcmp.eq.f32.partialorder %v272, 8.507059e+37
    %v274 = vand.u32 %v262, 2147483648
    %v275 = vor.u32 1.1754944e-38, %v274
    %v276 = vsel %vm273, %v275, %v271
    %v277 = vmul.f32 1.0, %v276
    %278 = vst.msk [vmem:[%s5] sm:$0xff] %vm223, %v277
    // Predicated region
    $region34: #{_forward_impl.1} parent=1 // pred_check
      _
    $region35: #{_forward_impl.1} parent=1 // pred_check_branch
      %280 = sbr.rel (0) target = $region37
    $region36: #{_forward_impl.1} parent=1 // pred_region
      _
    $region37: #{_forward_impl.1} parent=1 // pred_fallthru
      _
    // Predicated region
    $region38: #{_forward_impl.1} parent=1 // pred_check
      _
    $region39: #{_forward_impl.1} parent=1 // pred_check_branch
      %282 = sbr.rel (0) target = $region41
    $region40: #{_forward_impl.1} parent=1 // pred_region
      _
    $region41: #{_forward_impl.1} parent=1 // pred_fallthru
      _
    %283 = vsyncpa [#allocation3], 1
    %284 = vsyncpa [#allocation5], 1

</llo_original>
